<compile_context>
chip_gen: v7x
topology: tpu7x:2x2x1
jax: 0.10.0
libtpu: 0.0.40
codegen_flags: <defaults>
</compile_context>

<pallas_src>
import functools

import jax
import jax.numpy as jnp
from jax.experimental import pallas as pl
from jax.experimental.pallas import tpu as pltpu

LANE = 128  # TPU lane width


def _round_up(x, m):
    return ((x + m - 1) // m) * m


def _vmem_budget_bytes():
    """Per-TensorCore VMEM byte budget for this kernel's tiles.

    128 MiB on v5e/v6e, 64 MiB on v7x. Query the hardware when possible and
    keep ~25% headroom for Mosaic-internal scratch; otherwise fall back to a
    figure that is safe on every generation (including v7x's 64 MiB).
    """
    try:
        cap = int(pltpu.get_tpu_info().vmem_capacity_bytes)
        if cap > 0:
            return (cap * 3) // 4
    except Exception:
        pass
    return 48 * 1024 * 1024


# ----------------------------- Pallas kernel --------------------------------
def _fused_linear_kernel(x_ref, w_ref, b_ref, o_ref, acc_ref):
    # x_ref  : (tm, tk)  input tile (incoming dtype; cast to bf16 for the MXU)
    # w_ref  : (tk, tn)  packed bf16 weight slab (pre-transposed, lane-padded)
    # b_ref  : (1,  tn)  packed fp32 bias slab
    # o_ref  : (tm, tn)  output tile
    # acc_ref: (tm, tn)  fp32 accumulator scratch (lives across the K axis)
    k = pl.program_id(2)

    @pl.when(k == 0)
    def _init():
        acc_ref[...] = jnp.zeros_like(acc_ref)

    acc_ref[...] += jnp.dot(
        x_ref[...].astype(jnp.bfloat16),      # bf16 operands -> native MXU rate
        w_ref[...],
        preferred_element_type=jnp.float32,   # fp32 accumulate
    )

    @pl.when(k == pl.num_programs(2) - 1)
    def _finalize():
        o_ref[...] = (acc_ref[...] + b_ref[...]).astype(o_ref.dtype)


@functools.partial(
    jax.jit,
    static_argnames=("tm", "tn", "tk", "out_dtype", "vmem_limit", "single_buffer"),
)
def _fused_linear_pallas(x, w_packed, b_packed, *, tm, tn, tk, out_dtype,
                         vmem_limit, single_buffer):
    """y = concat_f(x @ W_f^T + b_f), lane-padded to (B, num_pad)."""
    B, n_in = x.shape
    num_pad = w_packed.shape[1]
    grid = (pl.cdiv(B, tm), num_pad // tn, n_in // tk)

    # When the whole packed weight/bias is resident (one N tile, one K tile),
    # double-buffering it just wastes a second (n_in, num_pad) slab of VMEM.
    resident_kw = {"pipeline_mode": pl.Buffered(1)} if single_buffer else {}

    return pl.pallas_call(
        _fused_linear_kernel,
        out_shape=jax.ShapeDtypeStruct((B, num_pad), out_dtype),
        grid=grid,
        in_specs=[
            pl.BlockSpec((tm, tk), lambda i, j, k: (i, k)),              # x tile
            pl.BlockSpec((tk, tn), lambda i, j, k: (k, j), **resident_kw),
            pl.BlockSpec((1, tn), lambda i, j, k: (0, j), **resident_kw),
        ],
        out_specs=pl.BlockSpec((tm, tn), lambda i, j, k: (i, j)),
        scratch_shapes=[pltpu.VMEM((tm, tn), jnp.float32)],
        compiler_params=pltpu.CompilerParams(
            # batch / output-column tiles are independent -> megacore sharding;
            # reduction axis is last and sequential.
            dimension_semantics=("parallel", "parallel", "arbitrary"),
            vmem_limit_bytes=int(vmem_limit),
        ),
    )(x, w_packed, b_packed)


# ----------------------------- Module wrapper --------------------------------
class LinearDictOut:
    """JAX/Pallas port of uwnet.modules.LinearDictOut.

    One Linear(n_in, num) per output field; all fields are computed in a
    single fused Pallas matmul over a packed, lane-padded bf16 weight.
    """

    _single_buffer_ok = True  # flipped off once if this jax rejects pipeline_mode

    def __init__(self, n_in, outputs, key):
        self.n_in = n_in
        self.outputs = list(outputs)
        self.vmem_budget = _vmem_budget_bytes()
        self.vmem_limit = self.vmem_budget

        # Per-field fp32 parameters (torch.nn.Linear default init), kept for
        # reference; the packed bf16 weight below is what forward uses.
        self.params = {}
        col_blocks, bias_blocks = [], []
        self.col_ranges = {}
        off = 0
        bound = 1.0 / (n_in ** 0.5)
        for field, num in self.outputs:
            key, wk, bk = jax.random.split(key, 3)
            w = jax.random.uniform(wk, (num, n_in), jnp.float32, -bound, bound)
            b = jax.random.uniform(bk, (num,), jnp.float32, -bound, bound)
            self.params[field] = (w, b)
            col_blocks.append(w.T)                      # (n_in, num) pre-transposed
            bias_blocks.append(b)
            self.col_ranges[field] = (off, off + num)
            off += num

        num_total = off
        num_pad = _round_up(max(num_total, 1), LANE)
        self.num_pad = num_pad

        w_cat = jnp.concatenate(col_blocks, axis=1)     # (n_in, num_total)
        b_cat = jnp.concatenate(bias_blocks, axis=0)    # (num_total,)
        # Zero-padded lanes -> lane-dense unmasked stores; padded columns stay
        # exactly zero and are sliced away. bf16 halves weight HBM/VMEM bytes;
        # bias is tiny and stays fp32 (added post-accumulation).
        self.w_packed = jnp.pad(
            w_cat, ((0, 0), (0, num_pad - num_total))).astype(jnp.bfloat16)
        self.b_packed = jnp.pad(
            b_cat, (0, num_pad - num_total)).reshape(1, num_pad)

        # ---- static N/K tiling (independent of batch) -----------------------
        if num_pad <= 512:
            tn = num_pad
        elif num_pad % 512 == 0:
            tn = 512           # >=256-wide tiles map well onto v6e/v7x 256x256 MXUs
        elif num_pad % 256 == 0:
            tn = 256
        else:
            tn = 128
        tk = n_in
        if n_in * tn * 2 > self.vmem_budget // 4:
            # Weight slab too large to keep whole-K resident: K-tile it, but
            # only by lane-aligned divisors so no ragged-K garbage enters the MXU.
            for cand in (512, 256, 128):
                if n_in % cand == 0:
                    tk = cand
                    break
        self.tn, self.tk = tn, tk
        self._weight_resident = (tk == n_in) and (tn == num_pad)

    # ---- batch tile from an explicit VMEM byte budget ---------------------
    def _pick_tm(self, B, x_itemsize, out_itemsize):
        tn, tk = self.tn, self.tk
        w_bufs = 1 if (self._weight_resident and LinearDictOut._single_buffer_ok) else 2
        resident = w_bufs * (tk * tn * 2 + tn * 4)        # weight (bf16) + bias (f32)
        per_row = 2 * tk * x_itemsize + 2 * tn * out_itemsize + tn * 4  # x/out dbl-buf + acc
        avail = self.vmem_budget - resident - (2 << 20)   # slack for Mosaic internals
        tm_cap = max(8, (avail // per_row) // 8 * 8)
        if B <= 16:
            tm_target = _round_up(B, 8)
        else:
            # >= 2 batch tiles: restores pipelining and v7x megacore sharding.
            tm_target = _round_up(pl.cdiv(B, 2), 16)
        return int(max(8, min(tm_cap, tm_target, 1024)))

    def _run(self, x):
        out_dtype = jnp.dtype(x.dtype)
        tm = self._pick_tm(x.shape[0], jnp.dtype(x.dtype).itemsize, out_dtype.itemsize)
        kwargs = dict(tm=tm, tn=self.tn, tk=self.tk, out_dtype=out_dtype,
                      vmem_limit=self.vmem_limit)
        if self._weight_resident and LinearDictOut._single_buffer_ok:
            try:
                return _fused_linear_pallas(x, self.w_packed, self.b_packed,
                                            single_buffer=True, **kwargs)
            except Exception:
                # This jax build rejects pipeline_mode on pallas_call BlockSpecs;
                # fall back to default double-buffering (correctness identical).
                LinearDictOut._single_buffer_ok = False
        return _fused_linear_pallas(x, self.w_packed, self.b_packed,
                                    single_buffer=False, **kwargs)

    def packed_forward(self, x):
        """Fused (B, num_pad) result + per-field column ranges.

        Avoids the per-field slice copies done by __call__ (each slice is an
        XLA copy that re-reads/re-writes the result from HBM); prefer this when
        the consumer can index the packed layout directly.
        """
        return self._run(x), dict(self.col_ranges)

    def __call__(self, x):
        y = self._run(x)
        # Glue-side split keeps the dict-of-tensors semantics of the torch
        # module (TensorDict ~ plain dict). Bandwidth-critical callers should
        # use packed_forward() instead.
        return {field: y[:, lo:hi] for field, (lo, hi) in self.col_ranges.items()}


# ----------------------------------- Main ------------------------------------
if __name__ == "__main__":
    key = jax.random.PRNGKey(0)
    key, xk, mk = jax.random.split(key, 3)

    batch, n_in = 8, 32
    outputs = [("sl", 16), ("qt", 16), ("prec", 1)]

    x = jax.random.normal(xk, (batch, n_in), jnp.float32)
    model = LinearDictOut(n_in, outputs, mk)

    out = model(x)
    out = jax.tree_util.tree_map(jax.block_until_ready, out)

    # Reference matching the kernel numerics (bf16 operands, fp32 accumulate),
    # plus a looser sanity check against the pure-fp32 reference.
    xb = x.astype(jnp.bfloat16).astype(jnp.float32)
    sizes = dict(outputs)
    for field, (w, b) in model.params.items():
        wb = w.astype(jnp.bfloat16).astype(jnp.float32)
        ref_bf = xb @ wb.T + b
        ref_32 = x @ w.T + b
        assert out[field].shape == (batch, sizes[field]), field
        assert jnp.allclose(out[field], ref_bf, atol=1e-4, rtol=1e-4), field
        assert jnp.allclose(out[field], ref_32, atol=5e-2, rtol=5e-2), field

    print("KERNEL_OK")
</pallas_src>

<mosaic_0001>
module attributes {stable_mosaic.version = 11 : i64} {
  func.func @_fused_linear_kernel(%arg0: i32, %arg1: i32, %arg2: i32, %arg3: memref<8x32xf32, #tpu.memory_space<vmem>>, %arg4: memref<32x128xbf16, #tpu.memory_space<vmem>>, %arg5: memref<1x128xf32, #tpu.memory_space<vmem>>, %arg6: memref<8x128xf32, #tpu.memory_space<vmem>>, %arg7: memref<8x128xf32, #tpu.memory_space<vmem>>) attributes {dimension_semantics = [#tpu.dimension_semantics<parallel>, #tpu.dimension_semantics<parallel>, #tpu.dimension_semantics<arbitrary>], iteration_bounds = array<i64: 1, 1, 1>, scalar_prefetch = 0 : i64, scratch_operands = 1 : i64, tpu.core_type = #tpu.core_type<tc>, window_params = [{transform_indices = @transform_0, window_bounds = array<i64: 8, 32>}, {pipeline_mode = #tpu.pipeline_mode<synchronous>, transform_indices = @transform_1, window_bounds = array<i64: 32, 128>}, {pipeline_mode = #tpu.pipeline_mode<synchronous>, transform_indices = @transform_2, window_bounds = array<i64: 1, 128>}, {transform_indices = @transform_3, window_bounds = array<i64: 8, 128>}]} {
    %c0_i32 = arith.constant 0 : i32
    %0 = arith.cmpi eq, %arg2, %c0_i32 : i32
    %1 = arith.extui %0 : i1 to i32
    %c0_i32_0 = arith.constant 0 : i32
    %2 = arith.cmpi ne, %1, %c0_i32_0 : i32
    scf.if %2 {
      %cst_10 = arith.constant 0.000000e+00 : f32
      %13 = vector.broadcast %cst_10 : f32 to vector<8x128xf32>
      %c0_11 = arith.constant 0 : index
      %c0_12 = arith.constant 0 : index
      %14 = vector.load %arg7[%c0_11, %c0_12] : memref<8x128xf32, #tpu.memory_space<vmem>>, vector<8x128xf32>
      tpu.vector_store %arg7[%c0_11, %c0_12], %13 {strides = array<i32>} : memref<8x128xf32, #tpu.memory_space<vmem>>, vector<8x128xf32>,
    } else {
    }
    %c0 = arith.constant 0 : index
    %c0_1 = arith.constant 0 : index
    %3 = vector.load %arg7[%c0, %c0_1] : memref<8x128xf32, #tpu.memory_space<vmem>>, vector<8x128xf32>
    %c0_2 = arith.constant 0 : index
    %c0_3 = arith.constant 0 : index
    %4 = vector.load %arg3[%c0_2, %c0_3] : memref<8x32xf32, #tpu.memory_space<vmem>>, vector<8x32xf32>
    %5 = arith.truncf %4 : vector<8x32xf32> to vector<8x32xbf16>
    %c0_4 = arith.constant 0 : index
    %c0_5 = arith.constant 0 : index
    %6 = vector.load %arg4[%c0_4, %c0_5] : memref<32x128xbf16, #tpu.memory_space<vmem>>, vector<32x128xbf16>
    %cst = arith.constant dense<0.000000e+00> : vector<8x128xf32>
    %7 = tpu.matmul %5, %6, %cst {dimension_numbers = #tpu.dot_dimension_numbers<[1], [0], [0], [1], [0, 0, 1, 1], [], []>} : vector<8x32xbf16>, vector<32x128xbf16>, vector<8x128xf32> -> vector<8x128xf32>
    %8 = arith.addf %3, %7 : vector<8x128xf32>
    %c0_6 = arith.constant 0 : index
    %c0_7 = arith.constant 0 : index
    %9 = vector.load %arg7[%c0_6, %c0_7] : memref<8x128xf32, #tpu.memory_space<vmem>>, vector<8x128xf32>
    tpu.vector_store %arg7[%c0_6, %c0_7], %8 {strides = array<i32>} : memref<8x128xf32, #tpu.memory_space<vmem>>, vector<8x128xf32>,
    %c0_i32_8 = arith.constant 0 : i32
    %10 = arith.cmpi eq, %arg2, %c0_i32_8 : i32
    %11 = arith.extui %10 : i1 to i32
    %c0_i32_9 = arith.constant 0 : i32
    %12 = arith.cmpi ne, %11, %c0_i32_9 : i32
    scf.if %12 {
      %c0_10 = arith.constant 0 : index
      %c0_11 = arith.constant 0 : index
      %13 = vector.load %arg7[%c0_10, %c0_11] : memref<8x128xf32, #tpu.memory_space<vmem>>, vector<8x128xf32>
      %c0_12 = arith.constant 0 : index
      %c0_13 = arith.constant 0 : index
      %14 = vector.load %arg5[%c0_12, %c0_13] : memref<1x128xf32, #tpu.memory_space<vmem>>, vector<1x128xf32>
      %15 = vector.broadcast %14 : vector<1x128xf32> to vector<8x128xf32>
      %16 = arith.addf %13, %15 : vector<8x128xf32>
      %c0_14 = arith.constant 0 : index
      %c0_15 = arith.constant 0 : index
      %17 = vector.load %arg6[%c0_14, %c0_15] : memref<8x128xf32, #tpu.memory_space<vmem>>, vector<8x128xf32>
      tpu.vector_store %arg6[%c0_14, %c0_15], %16 {strides = array<i32>} : memref<8x128xf32, #tpu.memory_space<vmem>>, vector<8x128xf32>,
    } else {
    }
    return
  }
  func.func @transform_0(%arg0: i32, %arg1: i32, %arg2: i32) -> (i32, i32) {
    %c0_i32 = arith.constant 0 : i32
    return %arg0, %arg2 : i32, i32
  }
  func.func @transform_1(%arg0: i32, %arg1: i32, %arg2: i32) -> (i32, i32) {
    %c0_i32 = arith.constant 0 : i32
    return %arg2, %arg1 : i32, i32
  }
  func.func @transform_2(%arg0: i32, %arg1: i32, %arg2: i32) -> (i32, i32) {
    %c0_i32 = arith.constant 0 : i32
    %c0_i32_0 = arith.constant 0 : i32
    return %c0_i32, %arg1 : i32, i32
  }
  func.func @transform_3(%arg0: i32, %arg1: i32, %arg2: i32) -> (i32, i32) {
    %c0_i32 = arith.constant 0 : i32
    return %arg0, %arg1 : i32, i32
  }
}

module attributes {stable_mosaic.version = 11 : i64} {
  func.func @_fused_linear_kernel(%arg0: i32, %arg1: i32, %arg2: i32, %arg3: memref<8x32xf32, #tpu.memory_space<vmem>>, %arg4: memref<32x128xbf16, #tpu.memory_space<vmem>>, %arg5: memref<1x128xf32, #tpu.memory_space<vmem>>, %arg6: memref<8x128xf32, #tpu.memory_space<vmem>>, %arg7: memref<8x128xf32, #tpu.memory_space<vmem>>) attributes {dimension_semantics = [#tpu.dimension_semantics<parallel>, #tpu.dimension_semantics<parallel>, #tpu.dimension_semantics<arbitrary>], iteration_bounds = array<i64: 1, 1, 1>, scalar_prefetch = 0 : i64, scratch_operands = 1 : i64, tpu.core_type = #tpu.core_type<tc>, window_params = [{transform_indices = @transform_0, window_bounds = array<i64: 8, 32>}, {transform_indices = @transform_1, window_bounds = array<i64: 32, 128>}, {transform_indices = @transform_2, window_bounds = array<i64: 1, 128>}, {transform_indices = @transform_3, window_bounds = array<i64: 8, 128>}]} {
    %c0_i32 = arith.constant 0 : i32
    %0 = arith.cmpi eq, %arg2, %c0_i32 : i32
    %1 = arith.extui %0 : i1 to i32
    %c0_i32_0 = arith.constant 0 : i32
    %2 = arith.cmpi ne, %1, %c0_i32_0 : i32
    scf.if %2 {
      %cst_10 = arith.constant 0.000000e+00 : f32
      %13 = vector.broadcast %cst_10 : f32 to vector<8x128xf32>
      %c0_11 = arith.constant 0 : index
      %c0_12 = arith.constant 0 : index
      %14 = vector.load %arg7[%c0_11, %c0_12] : memref<8x128xf32, #tpu.memory_space<vmem>>, vector<8x128xf32>
      tpu.vector_store %arg7[%c0_11, %c0_12], %13 {strides = array<i32>} : memref<8x128xf32, #tpu.memory_space<vmem>>, vector<8x128xf32>,
    } else {
    }
    %c0 = arith.constant 0 : index
    %c0_1 = arith.constant 0 : index
    %3 = vector.load %arg7[%c0, %c0_1] : memref<8x128xf32, #tpu.memory_space<vmem>>, vector<8x128xf32>
    %c0_2 = arith.constant 0 : index
    %c0_3 = arith.constant 0 : index
    %4 = vector.load %arg3[%c0_2, %c0_3] : memref<8x32xf32, #tpu.memory_space<vmem>>, vector<8x32xf32>
    %5 = arith.truncf %4 : vector<8x32xf32> to vector<8x32xbf16>
    %c0_4 = arith.constant 0 : index
    %c0_5 = arith.constant 0 : index
    %6 = vector.load %arg4[%c0_4, %c0_5] : memref<32x128xbf16, #tpu.memory_space<vmem>>, vector<32x128xbf16>
    %cst = arith.constant dense<0.000000e+00> : vector<8x128xf32>
    %7 = tpu.matmul %5, %6, %cst {dimension_numbers = #tpu.dot_dimension_numbers<[1], [0], [0], [1], [0, 0, 1, 1], [], []>} : vector<8x32xbf16>, vector<32x128xbf16>, vector<8x128xf32> -> vector<8x128xf32>
    %8 = arith.addf %3, %7 : vector<8x128xf32>
    %c0_6 = arith.constant 0 : index
    %c0_7 = arith.constant 0 : index
    %9 = vector.load %arg7[%c0_6, %c0_7] : memref<8x128xf32, #tpu.memory_space<vmem>>, vector<8x128xf32>
    tpu.vector_store %arg7[%c0_6, %c0_7], %8 {strides = array<i32>} : memref<8x128xf32, #tpu.memory_space<vmem>>, vector<8x128xf32>,
    %c0_i32_8 = arith.constant 0 : i32
    %10 = arith.cmpi eq, %arg2, %c0_i32_8 : i32
    %11 = arith.extui %10 : i1 to i32
    %c0_i32_9 = arith.constant 0 : i32
    %12 = arith.cmpi ne, %11, %c0_i32_9 : i32
    scf.if %12 {
      %c0_10 = arith.constant 0 : index
      %c0_11 = arith.constant 0 : index
      %13 = vector.load %arg7[%c0_10, %c0_11] : memref<8x128xf32, #tpu.memory_space<vmem>>, vector<8x128xf32>
      %c0_12 = arith.constant 0 : index
      %c0_13 = arith.constant 0 : index
      %14 = vector.load %arg5[%c0_12, %c0_13] : memref<1x128xf32, #tpu.memory_space<vmem>>, vector<1x128xf32>
      %15 = vector.broadcast %14 : vector<1x128xf32> to vector<8x128xf32>
      %16 = arith.addf %13, %15 : vector<8x128xf32>
      %c0_14 = arith.constant 0 : index
      %c0_15 = arith.constant 0 : index
      %17 = vector.load %arg6[%c0_14, %c0_15] : memref<8x128xf32, #tpu.memory_space<vmem>>, vector<8x128xf32>
      tpu.vector_store %arg6[%c0_14, %c0_15], %16 {strides = array<i32>} : memref<8x128xf32, #tpu.memory_space<vmem>>, vector<8x128xf32>,
    } else {
    }
    return
  }
  func.func @transform_0(%arg0: i32, %arg1: i32, %arg2: i32) -> (i32, i32) {
    %c0_i32 = arith.constant 0 : i32
    return %arg0, %arg2 : i32, i32
  }
  func.func @transform_1(%arg0: i32, %arg1: i32, %arg2: i32) -> (i32, i32) {
    %c0_i32 = arith.constant 0 : i32
    return %arg2, %arg1 : i32, i32
  }
  func.func @transform_2(%arg0: i32, %arg1: i32, %arg2: i32) -> (i32, i32) {
    %c0_i32 = arith.constant 0 : i32
    %c0_i32_0 = arith.constant 0 : i32
    return %c0_i32, %arg1 : i32, i32
  }
  func.func @transform_3(%arg0: i32, %arg1: i32, %arg2: i32) -> (i32, i32) {
    %c0_i32 = arith.constant 0 : i32
    return %arg0, %arg1 : i32, i32
  }
}

</mosaic_0001>

<llo_original>
// kernel: _fused_linear_pallas.1
$region0: #{_fused_linear_pallas.1}
  #allocation0 [shape = 'u32[]', space=smem, size = 0x4, offset = 0x4, fixed_abs, tag = 'smem constant byte address 0x4 - core index']
  #allocation1 [shape = 'u32[144,128]{1,0:T(1,128)}', space=vmem, size = 0x12000, scoped, tag = 'internal scratch']
  #allocation2 [shape = 'f32[8,128]{1,0:T(8,128)}', space=vmem, size = 0x1000, scoped, tag = 'scratch operand']
  %s0 = inlined_call_operand.hbm [shape: f32[8,32], index: 0, kind: input, shape index: {}]
  %s1 = inlined_call_operand.hbm [shape: bf16[32,128], index: 1, kind: input, shape index: {}]
  %s2 = inlined_call_operand.vmem [shape: f32[1,128], index: 2, kind: input, shape index: {}]
  %s3 = inlined_call_operand.hbm [shape: f32[8,128], index: 3, kind: output, shape index: {}]
  %s4 = sld [smem:[#allocation0]]
  $region38: #{_fused_linear_pallas.1} parent=0
    _
  %s6 = ssub.s32 1, %s4
  %s7 = scalar_select 0, %s6, %s4
  $region1: #{_fused_linear_pallas.1} parent=0
    #allocation3 [shape = 'u8[4096]{0}', space=vmem, size = 0x1000, scoped, tag = 'input window, operand 0, single buffered']
    #allocation4 [shape = 's32[1]{0}', space=sflag, size = 0x4, scoped, tag = 'scoped memory for _fused_linear_pallas.1']
    #allocation5 [shape = 's32[1]{0}', space=sflag, size = 0x4, scoped, tag = 'scoped memory for _fused_linear_pallas.1']
    #allocation6 [shape = 'u8[8192]{0}', space=vmem, size = 0x2000, scoped, tag = 'input window, operand 1, single buffered']
    #allocation7 [shape = 's32[1]{0}', space=sflag, size = 0x4, scoped, tag = 'scoped memory for _fused_linear_pallas.1']
    #allocation8 [shape = 'u8[4096]{0}', space=vmem, size = 0x1000, scoped, tag = 'output window, operand 0, single buffered']
    %8 = vsyncpa [#allocation4], 0
    %9 = vsyncpa [#allocation7], 0
    %10 = vsyncpa [#allocation5], 0
    // Predicated region
    $region2: #{_fused_linear_pallas.1} parent=1 // pred_check
      _
    $region3: #{_fused_linear_pallas.1} parent=1 // pred_check_branch
      %12 = sbr.rel (0) target = $region5
    $region4: #{_fused_linear_pallas.1} parent=1 // pred_region
      %s14 = ssub.s32 128, 128
      %15 = vsyncadd [#allocation4], %s14
      %s17 = sshll.u32 [#allocation3], 4
      %s18 = int_to_ptr.vmem [resolvable:$true] %s17
      %20 = dma.hbm_to_vmem [thread:$0]  %s0, 128, %s18, [#allocation4]
    $region5: #{_fused_linear_pallas.1} parent=1 // pred_fallthru
      _
    // Predicated region
    $region6: #{_fused_linear_pallas.1} parent=1 // pred_check
      _
    $region7: #{_fused_linear_pallas.1} parent=1 // pred_check_branch
      %22 = sbr.rel (0) target = $region9
    $region8: #{_fused_linear_pallas.1} parent=1 // pred_region
      %s24 = ssub.s32 256, 256
      %25 = vsyncadd [#allocation7], %s24
      %s26 = sshll.u32 [#allocation6], 4
      %s27 = int_to_ptr.vmem [resolvable:$true] %s26
      %32 = dma.hbm_to_vmem [thread:$0]  %s1, 256, %s27, [#allocation7], 64, 64, 4
    $region9: #{_fused_linear_pallas.1} parent=1 // pred_fallthru
      _
    // Predicated region
    $region10: #{_fused_linear_pallas.1} parent=1 // pred_check
      _
    $region11: #{_fused_linear_pallas.1} parent=1 // pred_check_branch
      %34 = sbr.rel (0) target = $region13
    $region12: #{_fused_linear_pallas.1} parent=1 // pred_region
      _
    $region13: #{_fused_linear_pallas.1} parent=1 // pred_fallthru
      _
    // Predicated region
    $region14: #{_fused_linear_pallas.1} parent=1 // pred_check
      _
    $region15: #{_fused_linear_pallas.1} parent=1 // pred_check_branch
      %36 = sbr.rel (0) target = $region17
    $region16: #{_fused_linear_pallas.1} parent=1 // pred_region
      %37 = dma.done [#allocation4], 128
    $region17: #{_fused_linear_pallas.1} parent=1 // pred_fallthru
      _
    // Predicated region
    $region18: #{_fused_linear_pallas.1} parent=1 // pred_check
      _
    $region19: #{_fused_linear_pallas.1} parent=1 // pred_check_branch
      %39 = sbr.rel (0) target = $region21
    $region20: #{_fused_linear_pallas.1} parent=1 // pred_region
      %40 = dma.done [#allocation7], 256
    $region21: #{_fused_linear_pallas.1} parent=1 // pred_fallthru
      _
    %p42 = scmp.eq.s32.totalorder 0, 0
    // Predicated region
    $region22: #{_fused_linear_pallas.1} parent=1 // pred_check
      %p43 = pneg %p42
    $region23: #{_fused_linear_pallas.1} parent=1 // pred_check_branch
      %45 = sbr.rel (%p43) target = $region25
    $region24: #{_fused_linear_pallas.1} parent=1 // pred_region
      %46 = vst [vmem:[#allocation2] sm:$0xff] 0.0
    $region25: #{_fused_linear_pallas.1} parent=1 // pred_fallthru
      _
    %v47 = vld [vmem:[#allocation2] sm:$0xff]
    %v48 = vld [vmem:[#allocation3] sm:$0xff]
    %v49 = vpack.c.bf16 %v48, %v48
    %v50 = vld [vmem:[#allocation6] sm:$0xf]
    %v51 = vld [vmem:[#allocation6 + $0x4] sm:$0xf]
    %v52 = vld [vmem:[#allocation6 + $0x8] sm:$0xf]
    %v53 = vld [vmem:[#allocation6 + $0xc] sm:$0xf]
    %v58 = vunpack.c.l.b16 %v50
    %v59 = vunpack.c.l.b16 %v51
    %v60 = vunpack.c.l.b16 %v52
    %v61 = vunpack.c.l.b16 %v53
    %v62 = vpack.c.b16 %v59, %v58
    %v63 = vpack.c.b16 %v61, %v60
    %vm66 = vcmask 261120
    %v68 = vsel %vm66, %v49, 0
    %70 = vmatprep.subr.bf16.mxu0 0
    %71 = vmatpush1.bf16.msra.mxu0 %v62
    %72 = vmatprep.subr.bf16.mxu0 0
    %73 = vmatpush1.bf16.msra.mxu0 %v63
    %74 = vmatprep.subr.bf16.mxu0 0
    %75 = vmatpush1.bf16.msra.mxu0 0
    %76 = vmatprep.subr.bf16.mxu0 0
    %77 = vmatpush1.bf16.msra.mxu0 0
    %78 = vmatprep.subr.bf16.mxu0 0
    %79 = vmatpush1.bf16.msra.mxu0 0
    %80 = vmatprep.subr.bf16.mxu0 0
    %81 = vmatpush1.bf16.msra.mxu0 0
    %82 = vmatprep.subr.bf16.mxu0 0
    %83 = vmatpush1.bf16.msra.mxu0 0
    %84 = vmatprep.subr.bf16.mxu0 0
    %85 = vmatpush1.bf16.msra.mxu0 0
    %86 = vmatprep.subr.bf16.mxu0 0
    %87 = vmatpush1.bf16.msra.mxu0 0
    %88 = vmatprep.subr.bf16.mxu0 0
    %89 = vmatpush1.bf16.msra.mxu0 0
    %90 = vmatprep.subr.bf16.mxu0 0
    %91 = vmatpush1.bf16.msra.mxu0 0
    %92 = vmatprep.subr.bf16.mxu0 0
    %93 = vmatpush1.bf16.msra.mxu0 0
    %94 = vmatprep.subr.bf16.mxu0 0
    %95 = vmatpush1.bf16.msra.mxu0 0
    %96 = vmatprep.subr.bf16.mxu0 0
    %97 = vmatpush1.bf16.msra.mxu0 0
    %98 = vmatprep.subr.bf16.mxu0 0
    %99 = vmatpush1.bf16.msra.mxu0 0
    %100 = vmatprep.subr.bf16.mxu0 0
    %101 = vmatpush1.bf16.msra.mxu0 0
    %102 = vmatprep.mubr.bf16.mxu0 0
    %103 = vmatmul.mubr.bf16.gmra.mrb[0].mxu0 %v68
    %v104 = vpop.f32.mrb[0].mxu0
    %v105 = vadd.f32 0.0, %v104
    %v106 = vpop.f32.mrb[0].mxu0
    %v107 = vpop.f32.mrb[0].mxu0
    %v108 = vpop.f32.mrb[0].mxu0
    %109 = vdwg.mxu0
    %v110 = vadd.f32 %v47, %v105
    %111 = vst [vmem:[#allocation2] sm:$0xff] %v110
    // Predicated region
    $region26: #{_fused_linear_pallas.1} parent=1 // pred_check
      %p112 = pneg %p42
    $region27: #{_fused_linear_pallas.1} parent=1 // pred_check_branch
      %114 = sbr.rel (%p112) target = $region29
    $region28: #{_fused_linear_pallas.1} parent=1 // pred_region
      %v115 = vld [vmem:[#allocation2] sm:$0xff]
      %v116 = vld [vmem:[%s2] sm:$0x1]
      %v118 = vlaneseq
      %v119 = vshrl.u32 %v118, 7
      %v120 = vsub.s32 0, %v119
      %v121 = vrot.slane %v116, %v120
      %v123 = vadd.f32 %v115, %v121
      %124 = vst [vmem:[#allocation8] sm:$0xff] %v123
    $region29: #{_fused_linear_pallas.1} parent=1 // pred_fallthru
      _
    // Predicated region
    $region30: #{_fused_linear_pallas.1} parent=1 // pred_check
      _
    $region31: #{_fused_linear_pallas.1} parent=1 // pred_check_branch
      %126 = sbr.rel (0) target = $region33
    $region32: #{_fused_linear_pallas.1} parent=1 // pred_region
      %s128 = ssub.s32 128, 128
      %129 = vsyncadd [#allocation5], %s128
      %s131 = sshll.u32 [#allocation8], 4
      %s132 = int_to_ptr.vmem [resolvable:$true] %s131
      %134 = dma.vmem_to_hbm [thread:$0]  %s132, 128, %s3, [#allocation5]
    $region33: #{_fused_linear_pallas.1} parent=1 // pred_fallthru
      _
    // Predicated region
    $region34: #{_fused_linear_pallas.1} parent=1 // pred_check
      _
    $region35: #{_fused_linear_pallas.1} parent=1 // pred_check_branch
      %136 = sbr.rel (0) target = $region37
    $region36: #{_fused_linear_pallas.1} parent=1 // pred_region
      %137 = dma.done [#allocation5], 128
    $region37: #{_fused_linear_pallas.1} parent=1 // pred_fallthru
      _
    %138 = vsyncpa [#allocation4], 1
    %139 = vsyncpa [#allocation7], 1
    %140 = vsyncpa [#allocation5], 1

// kernel: _fused_linear_pallas.1
$region0: #{_fused_linear_pallas.1}
  #allocation0 [shape = 'u32[]', space=smem, size = 0x4, offset = 0x4, fixed_abs, tag = 'smem constant byte address 0x4 - core index']
  #allocation1 [shape = 'u32[144,128]{1,0:T(1,128)}', space=vmem, size = 0x12000, scoped, tag = 'internal scratch']
  #allocation2 [shape = 'f32[8,128]{1,0:T(8,128)}', space=vmem, size = 0x1000, scoped, tag = 'scratch operand']
  %s0 = inlined_call_operand.hbm [shape: f32[8,32], index: 0, kind: input, shape index: {}]
  %s1 = inlined_call_operand.hbm [shape: bf16[32,128], index: 1, kind: input, shape index: {}]
  %s2 = inlined_call_operand.vmem [shape: f32[1,128], index: 2, kind: input, shape index: {}]
  %s3 = inlined_call_operand.hbm [shape: f32[8,128], index: 3, kind: output, shape index: {}]
  %s4 = sld [smem:[#allocation0]]
  $region38: #{_fused_linear_pallas.1} parent=0
    _
  %s6 = ssub.s32 1, %s4
  %s7 = scalar_select 0, %s6, %s4
  $region1: #{_fused_linear_pallas.1} parent=0
    #allocation3 [shape = 'u8[4096]{0}', space=vmem, size = 0x1000, scoped, tag = 'input window, operand 0, single buffered']
    #allocation4 [shape = 's32[1]{0}', space=sflag, size = 0x4, scoped, tag = 'scoped memory for _fused_linear_pallas.1']
    #allocation5 [shape = 's32[1]{0}', space=sflag, size = 0x4, scoped, tag = 'scoped memory for _fused_linear_pallas.1']
    #allocation6 [shape = 'u8[8192]{0}', space=vmem, size = 0x2000, scoped, tag = 'input window, operand 1, single buffered']
    #allocation7 [shape = 's32[1]{0}', space=sflag, size = 0x4, scoped, tag = 'scoped memory for _fused_linear_pallas.1']
    #allocation8 [shape = 'u8[4096]{0}', space=vmem, size = 0x1000, scoped, tag = 'output window, operand 0, single buffered']
    %8 = vsyncpa [#allocation4], 0
    %9 = vsyncpa [#allocation7], 0
    %10 = vsyncpa [#allocation5], 0
    // Predicated region
    $region2: #{_fused_linear_pallas.1} parent=1 // pred_check
      _
    $region3: #{_fused_linear_pallas.1} parent=1 // pred_check_branch
      %12 = sbr.rel (0) target = $region5
    $region4: #{_fused_linear_pallas.1} parent=1 // pred_region
      %s14 = ssub.s32 128, 128
      %15 = vsyncadd [#allocation4], %s14
      %s17 = sshll.u32 [#allocation3], 4
      %s18 = int_to_ptr.vmem [resolvable:$true] %s17
      %20 = dma.hbm_to_vmem [thread:$0]  %s0, 128, %s18, [#allocation4]
    $region5: #{_fused_linear_pallas.1} parent=1 // pred_fallthru
      _
    // Predicated region
    $region6: #{_fused_linear_pallas.1} parent=1 // pred_check
      _
    $region7: #{_fused_linear_pallas.1} parent=1 // pred_check_branch
      %22 = sbr.rel (0) target = $region9
    $region8: #{_fused_linear_pallas.1} parent=1 // pred_region
      %s24 = ssub.s32 256, 256
      %25 = vsyncadd [#allocation7], %s24
      %s26 = sshll.u32 [#allocation6], 4
      %s27 = int_to_ptr.vmem [resolvable:$true] %s26
      %32 = dma.hbm_to_vmem [thread:$0]  %s1, 256, %s27, [#allocation7], 64, 64, 4
    $region9: #{_fused_linear_pallas.1} parent=1 // pred_fallthru
      _
    // Predicated region
    $region10: #{_fused_linear_pallas.1} parent=1 // pred_check
      _
    $region11: #{_fused_linear_pallas.1} parent=1 // pred_check_branch
      %34 = sbr.rel (0) target = $region13
    $region12: #{_fused_linear_pallas.1} parent=1 // pred_region
      _
    $region13: #{_fused_linear_pallas.1} parent=1 // pred_fallthru
      _
    // Predicated region
    $region14: #{_fused_linear_pallas.1} parent=1 // pred_check
      _
    $region15: #{_fused_linear_pallas.1} parent=1 // pred_check_branch
      %36 = sbr.rel (0) target = $region17
    $region16: #{_fused_linear_pallas.1} parent=1 // pred_region
      %37 = dma.done [#allocation4], 128
    $region17: #{_fused_linear_pallas.1} parent=1 // pred_fallthru
      _
    // Predicated region
    $region18: #{_fused_linear_pallas.1} parent=1 // pred_check
      _
    $region19: #{_fused_linear_pallas.1} parent=1 // pred_check_branch
      %39 = sbr.rel (0) target = $region21
    $region20: #{_fused_linear_pallas.1} parent=1 // pred_region
      %40 = dma.done [#allocation7], 256
    $region21: #{_fused_linear_pallas.1} parent=1 // pred_fallthru
      _
    %p42 = scmp.eq.s32.totalorder 0, 0
    // Predicated region
    $region22: #{_fused_linear_pallas.1} parent=1 // pred_check
      %p43 = pneg %p42
    $region23: #{_fused_linear_pallas.1} parent=1 // pred_check_branch
      %45 = sbr.rel (%p43) target = $region25
    $region24: #{_fused_linear_pallas.1} parent=1 // pred_region
      %46 = vst [vmem:[#allocation2] sm:$0xff] 0.0
    $region25: #{_fused_linear_pallas.1} parent=1 // pred_fallthru
      _
    %v47 = vld [vmem:[#allocation2] sm:$0xff]
    %v48 = vld [vmem:[#allocation3] sm:$0xff]
    %v49 = vpack.c.bf16 %v48, %v48
    %v50 = vld [vmem:[#allocation6] sm:$0xf]
    %v51 = vld [vmem:[#allocation6 + $0x4] sm:$0xf]
    %v52 = vld [vmem:[#allocation6 + $0x8] sm:$0xf]
    %v53 = vld [vmem:[#allocation6 + $0xc] sm:$0xf]
    %v58 = vunpack.c.l.b16 %v50
    %v59 = vunpack.c.l.b16 %v51
    %v60 = vunpack.c.l.b16 %v52
    %v61 = vunpack.c.l.b16 %v53
    %v62 = vpack.c.b16 %v59, %v58
    %v63 = vpack.c.b16 %v61, %v60
    %vm66 = vcmask 261120
    %v68 = vsel %vm66, %v49, 0
    %70 = vmatprep.subr.bf16.mxu0 0
    %71 = vmatpush1.bf16.msra.mxu0 %v62
    %72 = vmatprep.subr.bf16.mxu0 0
    %73 = vmatpush1.bf16.msra.mxu0 %v63
    %74 = vmatprep.subr.bf16.mxu0 0
    %75 = vmatpush1.bf16.msra.mxu0 0
    %76 = vmatprep.subr.bf16.mxu0 0
    %77 = vmatpush1.bf16.msra.mxu0 0
    %78 = vmatprep.subr.bf16.mxu0 0
    %79 = vmatpush1.bf16.msra.mxu0 0
    %80 = vmatprep.subr.bf16.mxu0 0
    %81 = vmatpush1.bf16.msra.mxu0 0
    %82 = vmatprep.subr.bf16.mxu0 0
    %83 = vmatpush1.bf16.msra.mxu0 0
    %84 = vmatprep.subr.bf16.mxu0 0
    %85 = vmatpush1.bf16.msra.mxu0 0
    %86 = vmatprep.subr.bf16.mxu0 0
    %87 = vmatpush1.bf16.msra.mxu0 0
    %88 = vmatprep.subr.bf16.mxu0 0
    %89 = vmatpush1.bf16.msra.mxu0 0
    %90 = vmatprep.subr.bf16.mxu0 0
    %91 = vmatpush1.bf16.msra.mxu0 0
    %92 = vmatprep.subr.bf16.mxu0 0
    %93 = vmatpush1.bf16.msra.mxu0 0
    %94 = vmatprep.subr.bf16.mxu0 0
    %95 = vmatpush1.bf16.msra.mxu0 0
    %96 = vmatprep.subr.bf16.mxu0 0
    %97 = vmatpush1.bf16.msra.mxu0 0
    %98 = vmatprep.subr.bf16.mxu0 0
    %99 = vmatpush1.bf16.msra.mxu0 0
    %100 = vmatprep.subr.bf16.mxu0 0
    %101 = vmatpush1.bf16.msra.mxu0 0
    %102 = vmatprep.mubr.bf16.mxu0 0
    %103 = vmatmul.mubr.bf16.gmra.mrb[0].mxu0 %v68
    %v104 = vpop.f32.mrb[0].mxu0
    %v105 = vadd.f32 0.0, %v104
    %v106 = vpop.f32.mrb[0].mxu0
    %v107 = vpop.f32.mrb[0].mxu0
    %v108 = vpop.f32.mrb[0].mxu0
    %109 = vdwg.mxu0
    %v110 = vadd.f32 %v47, %v105
    %111 = vst [vmem:[#allocation2] sm:$0xff] %v110
    // Predicated region
    $region26: #{_fused_linear_pallas.1} parent=1 // pred_check
      %p112 = pneg %p42
    $region27: #{_fused_linear_pallas.1} parent=1 // pred_check_branch
      %114 = sbr.rel (%p112) target = $region29
    $region28: #{_fused_linear_pallas.1} parent=1 // pred_region
      %v115 = vld [vmem:[#allocation2] sm:$0xff]
      %v116 = vld [vmem:[%s2] sm:$0x1]
      %v118 = vlaneseq
      %v119 = vshrl.u32 %v118, 7
      %v120 = vsub.s32 0, %v119
      %v121 = vrot.slane %v116, %v120
      %v123 = vadd.f32 %v115, %v121
      %124 = vst [vmem:[#allocation8] sm:$0xff] %v123
    $region29: #{_fused_linear_pallas.1} parent=1 // pred_fallthru
      _
    // Predicated region
    $region30: #{_fused_linear_pallas.1} parent=1 // pred_check
      _
    $region31: #{_fused_linear_pallas.1} parent=1 // pred_check_branch
      %126 = sbr.rel (0) target = $region33
    $region32: #{_fused_linear_pallas.1} parent=1 // pred_region
      %s128 = ssub.s32 128, 128
      %129 = vsyncadd [#allocation5], %s128
      %s131 = sshll.u32 [#allocation8], 4
      %s132 = int_to_ptr.vmem [resolvable:$true] %s131
      %134 = dma.vmem_to_hbm [thread:$0]  %s132, 128, %s3, [#allocation5]
    $region33: #{_fused_linear_pallas.1} parent=1 // pred_fallthru
      _
    // Predicated region
    $region34: #{_fused_linear_pallas.1} parent=1 // pred_check
      _
    $region35: #{_fused_linear_pallas.1} parent=1 // pred_check_branch
      %136 = sbr.rel (0) target = $region37
    $region36: #{_fused_linear_pallas.1} parent=1 // pred_region
      %137 = dma.done [#allocation5], 128
    $region37: #{_fused_linear_pallas.1} parent=1 // pred_fallthru
      _
    %138 = vsyncpa [#allocation4], 1
    %139 = vsyncpa [#allocation7], 1
    %140 = vsyncpa [#allocation5], 1

</llo_original>
